<compile_context>
chip_gen: v7x
topology: tpu7x:2x2x1
jax: 0.10.0
libtpu: 0.0.40
codegen_flags: <defaults>
</compile_context>

<pallas_src>
import jax
import jax.numpy as jnp
from jax.experimental import pallas as pl
from jax.experimental.pallas import tpu as pltpu


def _proj_kernel(x_ref, w_ref, b_ref, o_ref):
    # x_ref: (tm, K) bf16 patches; w_ref: (K, E_pad) bf16; b_ref: (1, E) f32; o_ref: (tm, E)
    acc = jnp.dot(x_ref[...], w_ref[...], preferred_element_type=jnp.float32)  # (tm, E_pad) f32
    e = o_ref.shape[-1]
    o_ref[...] = (acc[:, :e] + b_ref[...]).astype(o_ref.dtype)


def _round_up(v, m):
    return ((v + m - 1) // m) * m


def _pick_tile_m(M, K, E, E_pad, in_itemsize, out_itemsize, budget_bytes=12 << 20):
    """Largest token tile whose VMEM working set (double-buffered input+output
    blocks, double-buffered resident weight+bias, +25% headroom for Mosaic
    scratch / layout padding) fits a conservative budget (safe for v5e/v6e
    128 MiB and v7x 64 MiB VMEM), then capped so grid_m >= ~8 for TC sharding
    and DMA/compute overlap."""
    def fits(tm):
        need = (2 * tm * K * in_itemsize        # double-buffered patch blocks
                + 2 * tm * E * out_itemsize     # double-buffered output blocks
                + 2 * K * E_pad * in_itemsize   # weight blocks (resident but double-buffered)
                + 2 * 1 * E_pad * out_itemsize) # bias blocks
        return need * 5 // 4 <= budget_bytes    # 25% headroom
    tm = None
    for cand in (2048, 1024, 512, 256, 128, 64, 32, 16, 8):
        if cand <= M and fits(cand):
            tm = cand
            break
    if tm is None:
        return M  # tiny M: single full-extent block
    # Cap the tile so there are ~8+ grid steps when M is large enough (v7x
    # dual-TC sharding needs >= 2 steps; more steps hide the input DMA).
    target = max(256, _round_up(-(-M // 8), 8))
    while tm > target and tm > 256:
        tm //= 2
    return tm


class TokenizerVideoPallas:
    """JAX/Pallas re-implementation of Tokenizer_video's forward pass."""

    # Explicit scoped-VMEM limit: v5e's default is 16 MiB, too small for the
    # larger tiles; do not remove.
    _VMEM_LIMIT_BYTES = 32 << 20

    def __init__(self, img_size=16, patch_size=8, in_chans=3, embed_dim=32,
                 frames=8, t_patch_size=4, *, key=None, dtype=jnp.float32):
        img_size = (img_size, img_size) if isinstance(img_size, int) else tuple(img_size)
        patch_size = (patch_size, patch_size) if isinstance(patch_size, int) else tuple(patch_size)
        assert img_size[1] % patch_size[1] == 0
        assert img_size[0] % patch_size[0] == 0
        assert frames % t_patch_size == 0

        self.img_size = img_size
        self.patch_size = patch_size
        self.frames = frames
        self.t_patch_size = t_patch_size
        self.in_chans = in_chans
        self.embed_dim = embed_dim
        self.grid_size = img_size[0] // patch_size[0]
        self.t_grid_size = frames // t_patch_size
        self.input_size = (self.t_grid_size,
                           img_size[0] // patch_size[0],
                           img_size[1] // patch_size[1])
        self.num_patches = (img_size[1] // patch_size[1]) * \
                           (img_size[0] // patch_size[0]) * self.t_grid_size

        # Deterministic parameter init (synthetic; mirrors Conv3d weight/bias shapes).
        if key is None:
            key = jax.random.PRNGKey(42)
        kw, kb = jax.random.split(key)
        tp, (ph, pw) = t_patch_size, patch_size
        # Conv3d weight: (E, C, tp, ph, pw); bias: (E,)
        self.conv_weight = (jax.random.normal(kw, (embed_dim, in_chans, tp, ph, pw),
                                              dtype=dtype) * 0.02)
        self.conv_bias = (jax.random.normal(kb, (embed_dim,), dtype=dtype) * 0.02)

        # Fold the conv weight into a (K, E) matmul weight; K = C * tp * ph * pw
        # matches the (C, tp, ph, pw) patch flattening order used in the wrapper.
        K = in_chans * tp * ph * pw
        self.k_dim = K
        w_mat = jnp.transpose(self.conv_weight.reshape(embed_dim, K))  # (K, E)

        # Lane-dense matmul weight: zero-pad E up to a multiple of 128 (E=32 -> 128).
        E_pad = max(_round_up(embed_dim, 128), 128)
        self.e_pad = E_pad
        # bf16 operand stream (accumulation stays f32 inside the kernel).
        self.w_pad = jnp.pad(w_mat, ((0, 0), (0, E_pad - embed_dim))).astype(jnp.bfloat16)
        self.bias_row = self.conv_bias.reshape(1, embed_dim).astype(jnp.float32)

        self._forward = jax.jit(self._forward_impl)

    def _forward_impl(self, x):
        B, C, T, H, W = x.shape
        assert H == self.img_size[0] and W == self.img_size[1], (
            f"Input image size ({H}*{W}) doesn't match model "
            f"({self.img_size[0]}*{self.img_size[1]}).")
        assert T == self.frames
        assert C == self.in_chans

        tp = self.t_patch_size
        ph, pw = self.patch_size
        Tp, Hp, Wp = T // tp, H // ph, W // pw
        E, E_pad = self.embed_dim, self.e_pad
        K = self.k_dim
        S = Hp * Wp
        M = B * Tp * S

        # --- patch extraction: one streaming XLA transpose+cast pass producing a
        #     contiguous bf16 (M, K) buffer; the kernel's tile DMAs then run at
        #     full HBM bandwidth (no 32-byte strided gathers). ---
        # (B, C, T, H, W) -> (B, C, Tp, tp, Hp, ph, Wp, pw)
        xp = x.reshape(B, C, Tp, tp, Hp, ph, Wp, pw)
        # -> (B, Tp, Hp, Wp, C, tp, ph, pw): rows enumerate tokens in (b, t', h', w') order
        xp = jnp.transpose(xp, (0, 2, 4, 6, 1, 3, 5, 7))
        patches = xp.reshape(M, K).astype(jnp.bfloat16)

        in_itemsize = jnp.dtype(jnp.bfloat16).itemsize
        out_itemsize = jnp.dtype(x.dtype).itemsize
        tm = _pick_tile_m(M, K, E, E_pad, in_itemsize, out_itemsize)
        grid_m = pl.cdiv(M, tm)
        # NOTE: a partial last tile (M % tm != 0) is handled by Pallas; M is a
        # multiple of Tp*Hp*Wp so the default tm candidates usually divide it.

        cost = pl.CostEstimate(
            flops=2 * M * K * E,
            transcendentals=0,
            bytes_accessed=(M * K * in_itemsize
                            + K * E_pad * in_itemsize
                            + E * 4
                            + M * E * out_itemsize),
        )

        out = pl.pallas_call(
            _proj_kernel,
            out_shape=jax.ShapeDtypeStruct((M, E), x.dtype),
            grid_spec=pltpu.PrefetchScalarGridSpec(
                num_scalar_prefetch=0,
                grid=(grid_m,),
                in_specs=[
                    pl.BlockSpec((tm, K), lambda i: (i, 0)),       # bf16 patch tiles (pipelined)
                    pl.BlockSpec((K, E_pad), lambda i: (0, 0)),    # bf16 weight: VMEM-resident
                    pl.BlockSpec((1, E), lambda i: (0, 0)),        # f32 bias:    VMEM-resident
                ],
                out_specs=pl.BlockSpec((tm, E), lambda i: (i, 0)), # unpadded (M, E) writeback
            ),
            compiler_params=pltpu.CompilerParams(
                dimension_semantics=("parallel",),   # shards token tiles across TCs on v7x
                vmem_limit_bytes=self._VMEM_LIMIT_BYTES,
            ),
            cost_estimate=cost,
        )(patches, self.w_pad, self.bias_row)

        # (B*Tp*S, E) -> (B, Tp, S, E) == einsum('ncts->ntsc') of the conv output.
        return out.reshape(B, Tp, S, E)

    def __call__(self, x):
        return self._forward(x)


def _reference_forward(tok, x):
    """Pure-JAX f32 reference: Conv3d (stride==kernel) + flatten(3) + einsum('ncts->ntsc')."""
    y = jax.lax.conv_general_dilated(
        x, tok.conv_weight,
        window_strides=(tok.t_patch_size, tok.patch_size[0], tok.patch_size[1]),
        padding="VALID",
        dimension_numbers=("NCTHW", "OITHW", "NCTHW"),
    )
    y = y + tok.conv_bias.reshape(1, -1, 1, 1, 1)
    B, E, Tp, Hp, Wp = y.shape
    y = y.reshape(B, E, Tp, Hp * Wp)          # flatten(3)
    return jnp.transpose(y, (0, 2, 3, 1))     # 'ncts->ntsc'


if __name__ == "__main__":
    # Small shapes consistent with the module: B=2, C=3, T=8 frames, 16x16 images,
    # patch 8x8 spatial, 4 temporal, embed_dim=32.
    B, C, T, H, W = 2, 3, 8, 16, 16
    tok = TokenizerVideoPallas(img_size=16, patch_size=8, in_chans=C,
                               embed_dim=32, frames=T, t_patch_size=4,
                               key=jax.random.PRNGKey(7))

    x = jax.random.normal(jax.random.PRNGKey(0), (B, C, T, H, W), dtype=jnp.float32)

    out = jax.block_until_ready(tok(x))
    ref = jax.block_until_ready(_reference_forward(tok, x))

    assert out.shape == (B, T // 4, (H // 8) * (W // 8), 32), out.shape
    # bf16 operand stream (f32 accumulation): loosened tolerance vs the f32 reference.
    assert jnp.allclose(out, ref, atol=3e-2, rtol=3e-2), float(jnp.max(jnp.abs(out - ref)))

    print("KERNEL_OK")
</pallas_src>

<mosaic_0001>
module attributes {stable_mosaic.version = 11 : i64} {
  func.func @_proj_kernel(%arg0: i32, %arg1: memref<16x768xbf16, #tpu.memory_space<vmem>>, %arg2: memref<768x128xbf16, #tpu.memory_space<vmem>>, %arg3: memref<1x32xf32, #tpu.memory_space<vmem>>, %arg4: memref<16x32xf32, #tpu.memory_space<vmem>>) attributes {dimension_semantics = [#tpu.dimension_semantics<parallel>], iteration_bounds = array<i64: 1>, scalar_prefetch = 0 : i64, scratch_operands = 0 : i64, tpu.core_type = #tpu.core_type<tc>, window_params = [{transform_indices = @transform_0, window_bounds = array<i64: 16, 768>}, {pipeline_mode = #tpu.pipeline_mode<synchronous>, transform_indices = @transform_1, window_bounds = array<i64: 768, 128>}, {pipeline_mode = #tpu.pipeline_mode<synchronous>, transform_indices = @transform_2, window_bounds = array<i64: 1, 32>}, {transform_indices = @transform_3, window_bounds = array<i64: 16, 32>}]} {
    %c0 = arith.constant 0 : index
    %c0_0 = arith.constant 0 : index
    %0 = vector.load %arg1[%c0, %c0_0] : memref<16x768xbf16, #tpu.memory_space<vmem>>, vector<16x768xbf16>
    %c0_1 = arith.constant 0 : index
    %c0_2 = arith.constant 0 : index
    %1 = vector.load %arg2[%c0_1, %c0_2] : memref<768x128xbf16, #tpu.memory_space<vmem>>, vector<768x128xbf16>
    %cst = arith.constant dense<0.000000e+00> : vector<16x128xf32>
    %2 = tpu.matmul %0, %1, %cst {dimension_numbers = #tpu.dot_dimension_numbers<[1], [0], [0], [1], [0, 0, 1, 1], [], []>} : vector<16x768xbf16>, vector<768x128xbf16>, vector<16x128xf32> -> vector<16x128xf32>
    %3 = vector.extract_strided_slice %2 {offsets = [0, 0], sizes = [16, 32], strides = [1, 1]} : vector<16x128xf32> to vector<16x32xf32>
    %c0_3 = arith.constant 0 : index
    %c0_4 = arith.constant 0 : index
    %4 = vector.load %arg3[%c0_3, %c0_4] : memref<1x32xf32, #tpu.memory_space<vmem>>, vector<1x32xf32>
    %5 = vector.broadcast %4 : vector<1x32xf32> to vector<16x32xf32>
    %6 = arith.addf %3, %5 : vector<16x32xf32>
    %c0_5 = arith.constant 0 : index
    %c0_6 = arith.constant 0 : index
    %7 = vector.load %arg4[%c0_5, %c0_6] : memref<16x32xf32, #tpu.memory_space<vmem>>, vector<16x32xf32>
    tpu.vector_store %arg4[%c0_5, %c0_6], %6 {strides = array<i32>} : memref<16x32xf32, #tpu.memory_space<vmem>>, vector<16x32xf32>,
    return
  }
  func.func @transform_0(%arg0: i32) -> (i32, i32) {
    %c0_i32 = arith.constant 0 : i32
    %c0_i32_0 = arith.constant 0 : i32
    return %arg0, %c0_i32 : i32, i32
  }
  func.func @transform_1(%arg0: i32) -> (i32, i32) {
    %c0_i32 = arith.constant 0 : i32
    %c0_i32_0 = arith.constant 0 : i32
    %c0_i32_1 = arith.constant 0 : i32
    return %c0_i32, %c0_i32_0 : i32, i32
  }
  func.func @transform_2(%arg0: i32) -> (i32, i32) {
    %c0_i32 = arith.constant 0 : i32
    %c0_i32_0 = arith.constant 0 : i32
    %c0_i32_1 = arith.constant 0 : i32
    return %c0_i32, %c0_i32_0 : i32, i32
  }
  func.func @transform_3(%arg0: i32) -> (i32, i32) {
    %c0_i32 = arith.constant 0 : i32
    %c0_i32_0 = arith.constant 0 : i32
    return %arg0, %c0_i32 : i32, i32
  }
}

</mosaic_0001>

<llo_original>
// kernel: _forward_impl.1
$region0: #{_forward_impl.1}
  #allocation0 [shape = 'u32[]', space=smem, size = 0x4, offset = 0x4, fixed_abs, tag = 'smem constant byte address 0x4 - core index']
  #allocation1 [shape = 'u32[144,128]{1,0:T(1,128)}', space=vmem, size = 0x12000, scoped, tag = 'internal scratch']
  %s0 = inlined_call_operand.vmem [shape: bf16[16,768], index: 0, kind: input, shape index: {}]
  %s1 = inlined_call_operand.vmem [shape: bf16[768,128], index: 1, kind: input, shape index: {}]
  %s2 = inlined_call_operand.vmem [shape: f32[1,32], index: 2, kind: input, shape index: {}]
  %s3 = inlined_call_operand.hbm [shape: f32[16,32], index: 3, kind: output, shape index: {}]
  %s4 = sld [smem:[#allocation0]]
  $region22: #{_forward_impl.1} parent=0
    _
  %s6 = ssub.s32 1, %s4
  %s7 = scalar_select 0, %s6, %s4
  $region1: #{_forward_impl.1} parent=0
    #allocation2 [shape = 'u8[8192]{0}', space=vmem, size = 0x2000, scoped, tag = 'output window, operand 0, single buffered']
    #allocation3 [shape = 's32[1]{0}', space=sflag, size = 0x4, scoped, tag = 'scoped memory for _forward_impl.1']
    %8 = vsyncpa [#allocation3], 0
    // Predicated region
    $region2: #{_forward_impl.1} parent=1 // pred_check
      _
    $region3: #{_forward_impl.1} parent=1 // pred_check_branch
      %10 = sbr.rel (0) target = $region5
    $region4: #{_forward_impl.1} parent=1 // pred_region
      _
    $region5: #{_forward_impl.1} parent=1 // pred_fallthru
      _
    // Predicated region
    $region6: #{_forward_impl.1} parent=1 // pred_check
      _
    $region7: #{_forward_impl.1} parent=1 // pred_check_branch
      %12 = sbr.rel (0) target = $region9
    $region8: #{_forward_impl.1} parent=1 // pred_region
      _
    $region9: #{_forward_impl.1} parent=1 // pred_fallthru
      _
    // Predicated region
    $region10: #{_forward_impl.1} parent=1 // pred_check
      _
    $region11: #{_forward_impl.1} parent=1 // pred_check_branch
      %14 = sbr.rel (0) target = $region13
    $region12: #{_forward_impl.1} parent=1 // pred_region
      _
    $region13: #{_forward_impl.1} parent=1 // pred_fallthru
      _
    %v16 = vld [vmem:[%s0] sm:$0xff]
    %v17 = vld [vmem:[%s0 + $0x8] sm:$0xff]
    %v18 = vld [vmem:[%s0 + $0x10] sm:$0xff]
    %v19 = vld [vmem:[%s0 + $0x18] sm:$0xff]
    %v20 = vld [vmem:[%s0 + $0x20] sm:$0xff]
    %v21 = vld [vmem:[%s0 + $0x28] sm:$0xff]
    %v22 = vld [vmem:[%s1] sm:$0xf]
    %v23 = vld [vmem:[%s1 + $0x4] sm:$0xf]
    %v24 = vld [vmem:[%s1 + $0x8] sm:$0xf]
    %v25 = vld [vmem:[%s1 + $0xc] sm:$0xf]
    %v26 = vld [vmem:[%s1 + $0x10] sm:$0xf]
    %v27 = vld [vmem:[%s1 + $0x14] sm:$0xf]
    %v28 = vld [vmem:[%s1 + $0x18] sm:$0xf]
    %v29 = vld [vmem:[%s1 + $0x1c] sm:$0xf]
    %v30 = vld [vmem:[%s1 + $0x20] sm:$0xf]
    %v31 = vld [vmem:[%s1 + $0x24] sm:$0xf]
    %v32 = vld [vmem:[%s1 + $0x28] sm:$0xf]
    %v33 = vld [vmem:[%s1 + $0x2c] sm:$0xf]
    %v34 = vld [vmem:[%s1 + $0x30] sm:$0xf]
    %v35 = vld [vmem:[%s1 + $0x34] sm:$0xf]
    %v36 = vld [vmem:[%s1 + $0x38] sm:$0xf]
    %v37 = vld [vmem:[%s1 + $0x3c] sm:$0xf]
    %v38 = vld [vmem:[%s1 + $0x40] sm:$0xf]
    %v39 = vld [vmem:[%s1 + $0x44] sm:$0xf]
    %v40 = vld [vmem:[%s1 + $0x48] sm:$0xf]
    %v41 = vld [vmem:[%s1 + $0x4c] sm:$0xf]
    %v42 = vld [vmem:[%s1 + $0x50] sm:$0xf]
    %v43 = vld [vmem:[%s1 + $0x54] sm:$0xf]
    %v44 = vld [vmem:[%s1 + $0x58] sm:$0xf]
    %v45 = vld [vmem:[%s1 + $0x5c] sm:$0xf]
    %v46 = vld [vmem:[%s1 + $0x60] sm:$0xf]
    %v47 = vld [vmem:[%s1 + $0x64] sm:$0xf]
    %v48 = vld [vmem:[%s1 + $0x68] sm:$0xf]
    %v49 = vld [vmem:[%s1 + $0x6c] sm:$0xf]
    %v50 = vld [vmem:[%s1 + $0x70] sm:$0xf]
    %v51 = vld [vmem:[%s1 + $0x74] sm:$0xf]
    %v52 = vld [vmem:[%s1 + $0x78] sm:$0xf]
    %v53 = vld [vmem:[%s1 + $0x7c] sm:$0xf]
    %v54 = vld [vmem:[%s1 + $0x80] sm:$0xf]
    %v55 = vld [vmem:[%s1 + $0x84] sm:$0xf]
    %v56 = vld [vmem:[%s1 + $0x88] sm:$0xf]
    %v57 = vld [vmem:[%s1 + $0x8c] sm:$0xf]
    %v58 = vld [vmem:[%s1 + $0x90] sm:$0xf]
    %v59 = vld [vmem:[%s1 + $0x94] sm:$0xf]
    %v60 = vld [vmem:[%s1 + $0x98] sm:$0xf]
    %v61 = vld [vmem:[%s1 + $0x9c] sm:$0xf]
    %v62 = vld [vmem:[%s1 + $0xa0] sm:$0xf]
    %v63 = vld [vmem:[%s1 + $0xa4] sm:$0xf]
    %v64 = vld [vmem:[%s1 + $0xa8] sm:$0xf]
    %v65 = vld [vmem:[%s1 + $0xac] sm:$0xf]
    %v66 = vld [vmem:[%s1 + $0xb0] sm:$0xf]
    %v67 = vld [vmem:[%s1 + $0xb4] sm:$0xf]
    %v68 = vld [vmem:[%s1 + $0xb8] sm:$0xf]
    %v69 = vld [vmem:[%s1 + $0xbc] sm:$0xf]
    %v70 = vld [vmem:[%s1 + $0xc0] sm:$0xf]
    %v71 = vld [vmem:[%s1 + $0xc4] sm:$0xf]
    %v72 = vld [vmem:[%s1 + $0xc8] sm:$0xf]
    %v73 = vld [vmem:[%s1 + $0xcc] sm:$0xf]
    %v74 = vld [vmem:[%s1 + $0xd0] sm:$0xf]
    %v75 = vld [vmem:[%s1 + $0xd4] sm:$0xf]
    %v76 = vld [vmem:[%s1 + $0xd8] sm:$0xf]
    %v77 = vld [vmem:[%s1 + $0xdc] sm:$0xf]
    %v78 = vld [vmem:[%s1 + $0xe0] sm:$0xf]
    %v79 = vld [vmem:[%s1 + $0xe4] sm:$0xf]
    %v80 = vld [vmem:[%s1 + $0xe8] sm:$0xf]
    %v81 = vld [vmem:[%s1 + $0xec] sm:$0xf]
    %v82 = vld [vmem:[%s1 + $0xf0] sm:$0xf]
    %v83 = vld [vmem:[%s1 + $0xf4] sm:$0xf]
    %v84 = vld [vmem:[%s1 + $0xf8] sm:$0xf]
    %v85 = vld [vmem:[%s1 + $0xfc] sm:$0xf]
    %v86 = vld [vmem:[%s1 + $0x100] sm:$0xf]
    %v87 = vld [vmem:[%s1 + $0x104] sm:$0xf]
    %v88 = vld [vmem:[%s1 + $0x108] sm:$0xf]
    %v89 = vld [vmem:[%s1 + $0x10c] sm:$0xf]
    %v90 = vld [vmem:[%s1 + $0x110] sm:$0xf]
    %v91 = vld [vmem:[%s1 + $0x114] sm:$0xf]
    %v92 = vld [vmem:[%s1 + $0x118] sm:$0xf]
    %v93 = vld [vmem:[%s1 + $0x11c] sm:$0xf]
    %v94 = vld [vmem:[%s1 + $0x120] sm:$0xf]
    %v95 = vld [vmem:[%s1 + $0x124] sm:$0xf]
    %v96 = vld [vmem:[%s1 + $0x128] sm:$0xf]
    %v97 = vld [vmem:[%s1 + $0x12c] sm:$0xf]
    %v98 = vld [vmem:[%s1 + $0x130] sm:$0xf]
    %v99 = vld [vmem:[%s1 + $0x134] sm:$0xf]
    %v100 = vld [vmem:[%s1 + $0x138] sm:$0xf]
    %v101 = vld [vmem:[%s1 + $0x13c] sm:$0xf]
    %v102 = vld [vmem:[%s1 + $0x140] sm:$0xf]
    %v103 = vld [vmem:[%s1 + $0x144] sm:$0xf]
    %v104 = vld [vmem:[%s1 + $0x148] sm:$0xf]
    %v105 = vld [vmem:[%s1 + $0x14c] sm:$0xf]
    %v106 = vld [vmem:[%s1 + $0x150] sm:$0xf]
    %v107 = vld [vmem:[%s1 + $0x154] sm:$0xf]
    %v108 = vld [vmem:[%s1 + $0x158] sm:$0xf]
    %v109 = vld [vmem:[%s1 + $0x15c] sm:$0xf]
    %v110 = vld [vmem:[%s1 + $0x160] sm:$0xf]
    %v111 = vld [vmem:[%s1 + $0x164] sm:$0xf]
    %v112 = vld [vmem:[%s1 + $0x168] sm:$0xf]
    %v113 = vld [vmem:[%s1 + $0x16c] sm:$0xf]
    %v114 = vld [vmem:[%s1 + $0x170] sm:$0xf]
    %v115 = vld [vmem:[%s1 + $0x174] sm:$0xf]
    %v116 = vld [vmem:[%s1 + $0x178] sm:$0xf]
    %v117 = vld [vmem:[%s1 + $0x17c] sm:$0xf]
    %v124 = vunpack.c.l.b16 %v16
    %v125 = vunpack.c.h.b16 %v16
    %v126 = vunpack.c.l.b16 %v17
    %v127 = vunpack.c.h.b16 %v17
    %v128 = vunpack.c.l.b16 %v18
    %v129 = vunpack.c.h.b16 %v18
    %v130 = vunpack.c.l.b16 %v19
    %v131 = vunpack.c.h.b16 %v19
    %v132 = vunpack.c.l.b16 %v20
    %v133 = vunpack.c.h.b16 %v20
    %v134 = vunpack.c.l.b16 %v21
    %v135 = vunpack.c.h.b16 %v21
    %v136 = vpack.c.b16 %v130, %v124
    %v137 = vpack.c.b16 %v131, %v125
    %v138 = vpack.c.b16 %v132, %v126
    %v139 = vpack.c.b16 %v133, %v127
    %v140 = vpack.c.b16 %v134, %v128
    %v141 = vpack.c.b16 %v135, %v129
    %v244 = vunpack.c.l.b16 %v22
    %v245 = vunpack.c.l.b16 %v23
    %v246 = vunpack.c.l.b16 %v24
    %v247 = vunpack.c.l.b16 %v25
    %v248 = vunpack.c.l.b16 %v26
    %v249 = vunpack.c.l.b16 %v27
    %v250 = vunpack.c.l.b16 %v28
    %v251 = vunpack.c.l.b16 %v29
    %v252 = vunpack.c.l.b16 %v30
    %v253 = vunpack.c.l.b16 %v31
    %v254 = vunpack.c.l.b16 %v32
    %v255 = vunpack.c.l.b16 %v33
    %v256 = vunpack.c.l.b16 %v34
    %v257 = vunpack.c.l.b16 %v35
    %v258 = vunpack.c.l.b16 %v36
    %v259 = vunpack.c.l.b16 %v37
    %v260 = vunpack.c.l.b16 %v38
    %v261 = vunpack.c.l.b16 %v39
    %v262 = vunpack.c.l.b16 %v40
    %v263 = vunpack.c.l.b16 %v41
    %v264 = vunpack.c.l.b16 %v42
    %v265 = vunpack.c.l.b16 %v43
    %v266 = vunpack.c.l.b16 %v44
    %v267 = vunpack.c.l.b16 %v45
    %v268 = vunpack.c.l.b16 %v46
    %v269 = vunpack.c.l.b16 %v47
    %v270 = vunpack.c.l.b16 %v48
    %v271 = vunpack.c.l.b16 %v49
    %v272 = vunpack.c.l.b16 %v50
    %v273 = vunpack.c.l.b16 %v51
    %v274 = vunpack.c.l.b16 %v52
    %v275 = vunpack.c.l.b16 %v53
    %v276 = vunpack.c.l.b16 %v54
    %v277 = vunpack.c.l.b16 %v55
    %v278 = vunpack.c.l.b16 %v56
    %v279 = vunpack.c.l.b16 %v57
    %v280 = vunpack.c.l.b16 %v58
    %v281 = vunpack.c.l.b16 %v59
    %v282 = vunpack.c.l.b16 %v60
    %v283 = vunpack.c.l.b16 %v61
    %v284 = vunpack.c.l.b16 %v62
    %v285 = vunpack.c.l.b16 %v63
    %v286 = vunpack.c.l.b16 %v64
    %v287 = vunpack.c.l.b16 %v65
    %v288 = vunpack.c.l.b16 %v66
    %v289 = vunpack.c.l.b16 %v67
    %v290 = vunpack.c.l.b16 %v68
    %v291 = vunpack.c.l.b16 %v69
    %v292 = vunpack.c.l.b16 %v70
    %v293 = vunpack.c.l.b16 %v71
    %v294 = vunpack.c.l.b16 %v72
    %v295 = vunpack.c.l.b16 %v73
    %v296 = vunpack.c.l.b16 %v74
    %v297 = vunpack.c.l.b16 %v75
    %v298 = vunpack.c.l.b16 %v76
    %v299 = vunpack.c.l.b16 %v77
    %v300 = vunpack.c.l.b16 %v78
    %v301 = vunpack.c.l.b16 %v79
    %v302 = vunpack.c.l.b16 %v80
    %v303 = vunpack.c.l.b16 %v81
    %v304 = vunpack.c.l.b16 %v82
    %v305 = vunpack.c.l.b16 %v83
    %v306 = vunpack.c.l.b16 %v84
    %v307 = vunpack.c.l.b16 %v85
    %v308 = vunpack.c.l.b16 %v86
    %v309 = vunpack.c.l.b16 %v87
    %v310 = vunpack.c.l.b16 %v88
    %v311 = vunpack.c.l.b16 %v89
    %v312 = vunpack.c.l.b16 %v90
    %v313 = vunpack.c.l.b16 %v91
    %v314 = vunpack.c.l.b16 %v92
    %v315 = vunpack.c.l.b16 %v93
    %v316 = vunpack.c.l.b16 %v94
    %v317 = vunpack.c.l.b16 %v95
    %v318 = vunpack.c.l.b16 %v96
    %v319 = vunpack.c.l.b16 %v97
    %v320 = vunpack.c.l.b16 %v98
    %v321 = vunpack.c.l.b16 %v99
    %v322 = vunpack.c.l.b16 %v100
    %v323 = vunpack.c.l.b16 %v101
    %v324 = vunpack.c.l.b16 %v102
    %v325 = vunpack.c.l.b16 %v103
    %v326 = vunpack.c.l.b16 %v104
    %v327 = vunpack.c.l.b16 %v105
    %v328 = vunpack.c.l.b16 %v106
    %v329 = vunpack.c.l.b16 %v107
    %v330 = vunpack.c.l.b16 %v108
    %v331 = vunpack.c.l.b16 %v109
    %v332 = vunpack.c.l.b16 %v110
    %v333 = vunpack.c.l.b16 %v111
    %v334 = vunpack.c.l.b16 %v112
    %v335 = vunpack.c.l.b16 %v113
    %v336 = vunpack.c.l.b16 %v114
    %v337 = vunpack.c.l.b16 %v115
    %v338 = vunpack.c.l.b16 %v116
    %v339 = vunpack.c.l.b16 %v117
    %v340 = vpack.c.b16 %v245, %v244
    %v341 = vpack.c.b16 %v247, %v246
    %v342 = vpack.c.b16 %v249, %v248
    %v343 = vpack.c.b16 %v251, %v250
    %v344 = vpack.c.b16 %v253, %v252
    %v345 = vpack.c.b16 %v255, %v254
    %v346 = vpack.c.b16 %v257, %v256
    %v347 = vpack.c.b16 %v259, %v258
    %v348 = vpack.c.b16 %v261, %v260
    %v349 = vpack.c.b16 %v263, %v262
    %v350 = vpack.c.b16 %v265, %v264
    %v351 = vpack.c.b16 %v267, %v266
    %v352 = vpack.c.b16 %v269, %v268
    %v353 = vpack.c.b16 %v271, %v270
    %v354 = vpack.c.b16 %v273, %v272
    %v355 = vpack.c.b16 %v275, %v274
    %v356 = vpack.c.b16 %v277, %v276
    %v357 = vpack.c.b16 %v279, %v278
    %v358 = vpack.c.b16 %v281, %v280
    %v359 = vpack.c.b16 %v283, %v282
    %v360 = vpack.c.b16 %v285, %v284
    %v361 = vpack.c.b16 %v287, %v286
    %v362 = vpack.c.b16 %v289, %v288
    %v363 = vpack.c.b16 %v291, %v290
    %v364 = vpack.c.b16 %v293, %v292
    %v365 = vpack.c.b16 %v295, %v294
    %v366 = vpack.c.b16 %v297, %v296
    %v367 = vpack.c.b16 %v299, %v298
    %v368 = vpack.c.b16 %v301, %v300
    %v369 = vpack.c.b16 %v303, %v302
    %v370 = vpack.c.b16 %v305, %v304
    %v371 = vpack.c.b16 %v307, %v306
    %v372 = vpack.c.b16 %v309, %v308
    %v373 = vpack.c.b16 %v311, %v310
    %v374 = vpack.c.b16 %v313, %v312
    %v375 = vpack.c.b16 %v315, %v314
    %v376 = vpack.c.b16 %v317, %v316
    %v377 = vpack.c.b16 %v319, %v318
    %v378 = vpack.c.b16 %v321, %v320
    %v379 = vpack.c.b16 %v323, %v322
    %v380 = vpack.c.b16 %v325, %v324
    %v381 = vpack.c.b16 %v327, %v326
    %v382 = vpack.c.b16 %v329, %v328
    %v383 = vpack.c.b16 %v331, %v330
    %v384 = vpack.c.b16 %v333, %v332
    %v385 = vpack.c.b16 %v335, %v334
    %v386 = vpack.c.b16 %v337, %v336
    %v387 = vpack.c.b16 %v339, %v338
    %436 = vmatprep.subr.bf16.mxu0 0
    %437 = vmatpush1.bf16.msra.mxu0 %v340
    %438 = vmatprep.subr.bf16.mxu0 0
    %439 = vmatpush1.bf16.msra.mxu0 %v341
    %440 = vmatprep.subr.bf16.mxu0 0
    %441 = vmatpush1.bf16.msra.mxu0 %v342
    %442 = vmatprep.subr.bf16.mxu0 0
    %443 = vmatpush1.bf16.msra.mxu0 %v343
    %444 = vmatprep.subr.bf16.mxu0 0
    %445 = vmatpush1.bf16.msra.mxu0 %v344
    %446 = vmatprep.subr.bf16.mxu0 0
    %447 = vmatpush1.bf16.msra.mxu0 %v345
    %448 = vmatprep.subr.bf16.mxu0 0
    %449 = vmatpush1.bf16.msra.mxu0 %v346
    %450 = vmatprep.subr.bf16.mxu0 0
    %451 = vmatpush1.bf16.msra.mxu0 %v347
    %452 = vmatprep.subr.bf16.mxu0 0
    %453 = vmatpush1.bf16.msra.mxu0 %v348
    %454 = vmatprep.subr.bf16.mxu0 0
    %455 = vmatpush1.bf16.msra.mxu0 %v349
    %456 = vmatprep.subr.bf16.mxu0 0
    %457 = vmatpush1.bf16.msra.mxu0 %v350
    %458 = vmatprep.subr.bf16.mxu0 0
    %459 = vmatpush1.bf16.msra.mxu0 %v351
    %460 = vmatprep.subr.bf16.mxu0 0
    %461 = vmatpush1.bf16.msra.mxu0 %v352
    %462 = vmatprep.subr.bf16.mxu0 0
    %463 = vmatpush1.bf16.msra.mxu0 %v353
    %464 = vmatprep.subr.bf16.mxu0 0
    %465 = vmatpush1.bf16.msra.mxu0 %v354
    %466 = vmatprep.subr.bf16.mxu0 0
    %467 = vmatpush1.bf16.msra.mxu0 %v355
    %468 = vmatprep.mubr.bf16.mxu0 %v137
    %469 = vmatmul.mubr.bf16.gmra.mrb[0].mxu0 %v136
    %v470 = vpop.f32.mrb[0].mxu0
    %v471 = vadd.f32 0.0, %v470
    %v472 = vpop.f32.mrb[0].mxu0
    %v473 = vpop.f32.mrb[0].mxu0
    %v474 = vadd.f32 0.0, %v473
    %v475 = vpop.f32.mrb[0].mxu0
    %476 = vdwg.mxu0
    %477 = vmatprep.subr.bf16.mxu0 0
    %478 = vmatpush1.bf16.msra.mxu0 %v356
    %479 = vmatprep.subr.bf16.mxu0 0
    %480 = vmatpush1.bf16.msra.mxu0 %v357
    %481 = vmatprep.subr.bf16.mxu0 0
    %482 = vmatpush1.bf16.msra.mxu0 %v358
    %483 = vmatprep.subr.bf16.mxu0 0
    %484 = vmatpush1.bf16.msra.mxu0 %v359
    %485 = vmatprep.subr.bf16.mxu0 0
    %486 = vmatpush1.bf16.msra.mxu0 %v360
    %487 = vmatprep.subr.bf16.mxu0 0
    %488 = vmatpush1.bf16.msra.mxu0 %v361
    %489 = vmatprep.subr.bf16.mxu0 0
    %490 = vmatpush1.bf16.msra.mxu0 %v362
    %491 = vmatprep.subr.bf16.mxu0 0
    %492 = vmatpush1.bf16.msra.mxu0 %v363
    %493 = vmatprep.subr.bf16.mxu0 0
    %494 = vmatpush1.bf16.msra.mxu0 %v364
    %495 = vmatprep.subr.bf16.mxu0 0
    %496 = vmatpush1.bf16.msra.mxu0 %v365
    %497 = vmatprep.subr.bf16.mxu0 0
    %498 = vmatpush1.bf16.msra.mxu0 %v366
    %499 = vmatprep.subr.bf16.mxu0 0
    %500 = vmatpush1.bf16.msra.mxu0 %v367
    %501 = vmatprep.subr.bf16.mxu0 0
    %502 = vmatpush1.bf16.msra.mxu0 %v368
    %503 = vmatprep.subr.bf16.mxu0 0
    %504 = vmatpush1.bf16.msra.mxu0 %v369
    %505 = vmatprep.subr.bf16.mxu0 0
    %506 = vmatpush1.bf16.msra.mxu0 %v370
    %507 = vmatprep.subr.bf16.mxu0 0
    %508 = vmatpush1.bf16.msra.mxu0 %v371
    %509 = vmatprep.mubr.bf16.mxu0 %v139
    %510 = vmatmul.mubr.bf16.gmra.mrb[0].mxu0 %v138
    %v511 = vpop.f32.mrb[0].mxu0
    %v512 = vadd.f32 %v471, %v511
    %v513 = vpop.f32.mrb[0].mxu0
    %v514 = vpop.f32.mrb[0].mxu0
    %v515 = vadd.f32 %v474, %v514
    %v516 = vpop.f32.mrb[0].mxu0
    %517 = vdwg.mxu0
    %518 = vmatprep.subr.bf16.mxu0 0
    %519 = vmatpush1.bf16.msra.mxu0 %v372
    %520 = vmatprep.subr.bf16.mxu0 0
    %521 = vmatpush1.bf16.msra.mxu0 %v373
    %522 = vmatprep.subr.bf16.mxu0 0
    %523 = vmatpush1.bf16.msra.mxu0 %v374
    %524 = vmatprep.subr.bf16.mxu0 0
    %525 = vmatpush1.bf16.msra.mxu0 %v375
    %526 = vmatprep.subr.bf16.mxu0 0
    %527 = vmatpush1.bf16.msra.mxu0 %v376
    %528 = vmatprep.subr.bf16.mxu0 0
    %529 = vmatpush1.bf16.msra.mxu0 %v377
    %530 = vmatprep.subr.bf16.mxu0 0
    %531 = vmatpush1.bf16.msra.mxu0 %v378
    %532 = vmatprep.subr.bf16.mxu0 0
    %533 = vmatpush1.bf16.msra.mxu0 %v379
    %534 = vmatprep.subr.bf16.mxu0 0
    %535 = vmatpush1.bf16.msra.mxu0 %v380
    %536 = vmatprep.subr.bf16.mxu0 0
    %537 = vmatpush1.bf16.msra.mxu0 %v381
    %538 = vmatprep.subr.bf16.mxu0 0
    %539 = vmatpush1.bf16.msra.mxu0 %v382
    %540 = vmatprep.subr.bf16.mxu0 0
    %541 = vmatpush1.bf16.msra.mxu0 %v383
    %542 = vmatprep.subr.bf16.mxu0 0
    %543 = vmatpush1.bf16.msra.mxu0 %v384
    %544 = vmatprep.subr.bf16.mxu0 0
    %545 = vmatpush1.bf16.msra.mxu0 %v385
    %546 = vmatprep.subr.bf16.mxu0 0
    %547 = vmatpush1.bf16.msra.mxu0 %v386
    %548 = vmatprep.subr.bf16.mxu0 0
    %549 = vmatpush1.bf16.msra.mxu0 %v387
    %550 = vmatprep.mubr.bf16.mxu0 %v141
    %551 = vmatmul.mubr.bf16.gmra.mrb[0].mxu0 %v140
    %v552 = vpop.f32.mrb[0].mxu0
    %v553 = vadd.f32 %v512, %v552
    %v554 = vpop.f32.mrb[0].mxu0
    %v555 = vpop.f32.mrb[0].mxu0
    %v556 = vadd.f32 %v515, %v555
    %v557 = vpop.f32.mrb[0].mxu0
    %558 = vdwg.mxu0
    %v559 = vld [vmem:[%s2] sm:$0x1]
    %v561 = vlaneseq
    %v562 = vshrl.u32 %v561, 7
    %v563 = vsub.s32 0, %v562
    %v564 = vrot.slane %v559, %v563
    %v566 = vadd.f32 %v553, %v564
    %v567 = vadd.f32 %v556, %v564
    %vm568 = vcmask 261120
    %569 = vst.msk [vmem:[#allocation2] sm:$0xff] %vm568, %v566
    %570 = vst.msk [vmem:[#allocation2 + $0x8] sm:$0xff] %vm568, %v567
    // Predicated region
    $region14: #{_forward_impl.1} parent=1 // pred_check
      _
    $region15: #{_forward_impl.1} parent=1 // pred_check_branch
      %572 = sbr.rel (0) target = $region17
    $region16: #{_forward_impl.1} parent=1 // pred_region
      %s574 = ssub.s32 256, 256
      %575 = vsyncadd [#allocation3], %s574
      %s576 = sshll.u32 [#allocation2], 4
      %s577 = int_to_ptr.vmem [resolvable:$true] %s576
      %582 = dma.vmem_to_hbm [thread:$0]  %s577, 256, %s3, [#allocation3], 128, 128, 8
    $region17: #{_forward_impl.1} parent=1 // pred_fallthru
      _
    // Predicated region
    $region18: #{_forward_impl.1} parent=1 // pred_check
      _
    $region19: #{_forward_impl.1} parent=1 // pred_check_branch
      %584 = sbr.rel (0) target = $region21
    $region20: #{_forward_impl.1} parent=1 // pred_region
      %585 = dma.done [#allocation3], 256
    $region21: #{_forward_impl.1} parent=1 // pred_fallthru
      _
    %586 = vsyncpa [#allocation3], 1

</llo_original>
